<compile_context>
chip_gen: v5e
topology: v5e:2x2
jax: 0.10.0
libtpu: 0.0.40
codegen_flags: <defaults>
</compile_context>

<pallas_src>
import functools
import math

import jax
import jax.numpy as jnp
from jax.experimental import pallas as pl
from jax.experimental.pallas import tpu as pltpu


def _round_up(x, m):
    return ((x + m - 1) // m) * m


# ---------------------------------------------------------------------------
# Stage 1: support = X @ W   (computed once, stored bf16 for stage 2's MXU)
# ---------------------------------------------------------------------------
def support_kernel(x_ref, w_ref, s_ref):
    s_ref[...] = jnp.dot(
        x_ref[...], w_ref[...], preferred_element_type=jnp.float32
    ).astype(s_ref.dtype)


# ---------------------------------------------------------------------------
# Stage 2: out = sum_g gamma[g] * (A_g @ support) + bias   (tiled k-reduction)
# ---------------------------------------------------------------------------
def aggregate_kernel(gamma_ref, adj_ref, sup_ref, b_ref, o_ref, acc_ref, *, n_adj):
    k = pl.program_id(1)

    @pl.when(k == 0)
    def _():
        acc_ref[...] = jnp.zeros_like(acc_ref)

    sup = sup_ref[...]                       # (tk, Fout_pad) bf16, reused for all g
    acc = acc_ref[...]
    for g in range(n_adj):                   # static unroll: G is small
        acc = acc + gamma_ref[g] * jnp.dot(
            adj_ref[g], sup, preferred_element_type=jnp.float32)
    acc_ref[...] = acc

    @pl.when(k == pl.num_programs(1) - 1)
    def _():
        o_ref[...] = (acc_ref[...] + b_ref[...]).astype(o_ref.dtype)


def graph_convolution_modified(x, adjs, weight, gamma, bias=None):
    """Forward of GraphConvolutionModified.

    x:      [N, Fin] node features
    adjs:   [>= G+1, N, N] stacked dense adjacencies; forward uses adjs[1:G+1]
    weight: [Fin, Fout]
    gamma:  [G] neighborhood mixing weights (G == n_neighbors + 1)
    bias:   [Fout] or None
    """
    x = jnp.asarray(x)
    weight = jnp.asarray(weight)
    gamma = jnp.asarray(gamma, dtype=jnp.float32)
    adjs = jnp.asarray(adjs)

    N, Fin = x.shape
    Fout = weight.shape[1]
    G = int(gamma.shape[0])
    adj_used = adjs[1:G + 1]                 # mirrors torch indexing; adjs[0] unused

    # ---- padding / tiling --------------------------------------------------
    Fout_pad = _round_up(Fout, 128)          # lane-dense stores + full MXU columns
    if N <= 256:
        tm = tk = _round_up(N, 128)          # single tile in each dim
        N_pad = tm
    else:
        tm, tk = 256, 512                    # fits default scoped VMEM on v5e/v6e/v7x
        N_pad = _round_up(N, tk)             # tm divides tk divides N_pad

    x_p = jnp.zeros((N_pad, Fin), jnp.bfloat16).at[:N, :].set(
        x.astype(jnp.bfloat16))
    w_p = jnp.zeros((Fin, Fout_pad), jnp.bfloat16).at[:, :Fout].set(
        weight.astype(jnp.bfloat16))
    adj_p = jnp.zeros((G, N_pad, N_pad), jnp.bfloat16).at[:, :N, :N].set(
        adj_used.astype(jnp.bfloat16))
    b_p = jnp.zeros((1, Fout_pad), jnp.float32)
    if bias is not None:
        b_p = b_p.at[0, :Fout].set(jnp.asarray(bias, jnp.float32))

    # ---- stage 1: support = X @ W  ------------------------------------------
    support = pl.pallas_call(
        support_kernel,
        out_shape=jax.ShapeDtypeStruct((N_pad, Fout_pad), jnp.bfloat16),
        grid_spec=pltpu.PrefetchScalarGridSpec(
            num_scalar_prefetch=0,
            grid=(N_pad // tm,),
            in_specs=[
                pl.BlockSpec((tm, Fin), lambda i: (i, 0)),
                pl.BlockSpec((Fin, Fout_pad), lambda i: (0, 0)),
            ],
            out_specs=pl.BlockSpec((tm, Fout_pad), lambda i: (i, 0)),
        ),
        compiler_params=pltpu.CompilerParams(
            dimension_semantics=("parallel",)),
        cost_estimate=pl.CostEstimate(
            flops=2 * N_pad * Fin * Fout_pad,
            transcendentals=0,
            bytes_accessed=(N_pad * Fin + Fin * Fout_pad + N_pad * Fout_pad) * 2,
        ),
    )(x_p, w_p)

    # ---- stage 2: weighted neighborhood aggregation -------------------------
    num_i = N_pad // tm
    num_k = N_pad // tk
    out_p = pl.pallas_call(
        functools.partial(aggregate_kernel, n_adj=G),
        out_shape=jax.ShapeDtypeStruct((N_pad, Fout_pad), jnp.float32),
        grid_spec=pltpu.PrefetchScalarGridSpec(
            num_scalar_prefetch=0,
            grid=(num_i, num_k),
            in_specs=[
                pl.BlockSpec(memory_space=pltpu.MemorySpace.SMEM),   # gamma [G]
                pl.BlockSpec((G, tm, tk), lambda i, k: (0, i, k)),   # adjacencies
                pl.BlockSpec((tk, Fout_pad), lambda i, k: (k, 0)),   # support
                pl.BlockSpec((1, Fout_pad), lambda i, k: (0, 0)),    # bias (resident)
            ],
            out_specs=pl.BlockSpec((tm, Fout_pad), lambda i, k: (i, 0)),
            scratch_shapes=[pltpu.VMEM((tm, Fout_pad), jnp.float32)],
        ),
        compiler_params=pltpu.CompilerParams(
            dimension_semantics=("parallel", "arbitrary")),
        cost_estimate=pl.CostEstimate(
            flops=2 * G * N_pad * N_pad * Fout_pad,
            transcendentals=0,
            bytes_accessed=(G * N_pad * N_pad * 2
                            + num_i * N_pad * Fout_pad * 2
                            + N_pad * Fout_pad * 4
                            + Fout_pad * 4),
        ),
    )(gamma, adj_p, support, b_p)

    return out_p[:N, :Fout]


def reference(x, adjs, weight, gamma, bias):
    support = x @ weight
    G = gamma.shape[0]
    out = gamma[0] * (adjs[1] @ support)
    for i in range(1, G):
        out = out + gamma[i] * (adjs[i + 1] @ support)
    if bias is not None:
        out = out + bias[None, :]
    return out


if __name__ == "__main__":
    # Small shapes consistent with the module: N nodes, Fin -> Fout, n_neighbors = 2.
    N, IN_FEATURES, OUT_FEATURES, N_NEIGHBORS = 64, 32, 16, 2
    G = N_NEIGHBORS + 1                      # == module's self.n_neighbors

    key = jax.random.PRNGKey(0)
    k_x, k_adj, k_w, k_g, k_b = jax.random.split(key, 5)

    # reset_parameters(): stdv = 1 / sqrt(out_features); gamma ~ U(0, 1)
    stdv = 1.0 / math.sqrt(OUT_FEATURES)
    weight = jax.random.uniform(k_w, (IN_FEATURES, OUT_FEATURES),
                                minval=-stdv, maxval=stdv, dtype=jnp.float32)
    gamma = jax.random.uniform(k_g, (G,), minval=0.0, maxval=1.0,
                               dtype=jnp.float32)
    bias = jax.random.uniform(k_b, (OUT_FEATURES,),
                              minval=-stdv, maxval=stdv, dtype=jnp.float32)

    x = jax.random.normal(k_x, (N, IN_FEATURES), dtype=jnp.float32)
    # adjs[0] is unused by the forward; adjs[1:G+1] are row-normalized adjacencies.
    adj_raw = jax.random.uniform(k_adj, (G + 1, N, N), dtype=jnp.float32)
    adjs = adj_raw / jnp.sum(adj_raw, axis=-1, keepdims=True)

    out = graph_convolution_modified(x, adjs, weight, gamma, bias)
    out = jax.block_until_ready(out)

    ref = reference(x, adjs, weight, gamma, bias)
    assert out.shape == (N, OUT_FEATURES)
    # bf16 MXU inputs with f32 accumulation -> slightly loosened tolerance.
    assert jnp.allclose(out, ref, atol=2e-2, rtol=2e-2), (
        "mismatch vs reference: max abs diff = "
        f"{float(jnp.max(jnp.abs(out - ref)))}")

    print("KERNEL_OK")
</pallas_src>

<mosaic_0001>
module attributes {stable_mosaic.version = 11 : i64} {
  func.func @support_kernel(%arg0: i32, %arg1: memref<128x32xbf16, #tpu.memory_space<vmem>>, %arg2: memref<32x128xbf16, #tpu.memory_space<vmem>>, %arg3: memref<128x128xbf16, #tpu.memory_space<vmem>>) attributes {dimension_semantics = [#tpu.dimension_semantics<parallel>], iteration_bounds = array<i64: 1>, scalar_prefetch = 0 : i64, scratch_operands = 0 : i64, tpu.core_type = #tpu.core_type<tc>, window_params = [{transform_indices = @transform_0, window_bounds = array<i64: 128, 32>}, {pipeline_mode = #tpu.pipeline_mode<synchronous>, transform_indices = @transform_1, window_bounds = array<i64: 32, 128>}, {transform_indices = @transform_2, window_bounds = array<i64: 128, 128>}]} {
    %c0 = arith.constant 0 : index
    %c0_0 = arith.constant 0 : index
    %0 = vector.load %arg1[%c0, %c0_0] : memref<128x32xbf16, #tpu.memory_space<vmem>>, vector<128x32xbf16>
    %c0_1 = arith.constant 0 : index
    %c0_2 = arith.constant 0 : index
    %1 = vector.load %arg2[%c0_1, %c0_2] : memref<32x128xbf16, #tpu.memory_space<vmem>>, vector<32x128xbf16>
    %cst = arith.constant dense<0.000000e+00> : vector<128x128xf32>
    %2 = tpu.matmul %0, %1, %cst {dimension_numbers = #tpu.dot_dimension_numbers<[1], [0], [0], [1], [0, 0, 1, 1], [], []>} : vector<128x32xbf16>, vector<32x128xbf16>, vector<128x128xf32> -> vector<128x128xf32>
    %3 = arith.truncf %2 : vector<128x128xf32> to vector<128x128xbf16>
    %c0_3 = arith.constant 0 : index
    %c0_4 = arith.constant 0 : index
    %4 = vector.load %arg3[%c0_3, %c0_4] : memref<128x128xbf16, #tpu.memory_space<vmem>>, vector<128x128xbf16>
    tpu.vector_store %arg3[%c0_3, %c0_4], %3 {strides = array<i32>} : memref<128x128xbf16, #tpu.memory_space<vmem>>, vector<128x128xbf16>,
    return
  }
  func.func @transform_0(%arg0: i32) -> (i32, i32) {
    %c0_i32 = arith.constant 0 : i32
    %c0_i32_0 = arith.constant 0 : i32
    return %arg0, %c0_i32 : i32, i32
  }
  func.func @transform_1(%arg0: i32) -> (i32, i32) {
    %c0_i32 = arith.constant 0 : i32
    %c0_i32_0 = arith.constant 0 : i32
    %c0_i32_1 = arith.constant 0 : i32
    return %c0_i32, %c0_i32_0 : i32, i32
  }
  func.func @transform_2(%arg0: i32) -> (i32, i32) {
    %c0_i32 = arith.constant 0 : i32
    %c0_i32_0 = arith.constant 0 : i32
    return %arg0, %c0_i32 : i32, i32
  }
}

</mosaic_0001>

<llo_original>
// kernel: tpu_custom_call.1
$region0: #{tpu_custom_call.1}
  #allocation0 [shape = 'u32[]', space=smem, size = 0x4, offset = 0x4, fixed_abs, tag = 'smem constant byte address 0x4 - core index']
  #allocation1 [shape = 'u32[72,128]{1,0:T(1,128)}', space=vmem, size = 0x9000, scoped, tag = 'internal scratch']
  %s0 = inlined_call_operand.vmem [shape: bf16[128,32], index: 0, kind: input, shape index: {}]
  %s1 = inlined_call_operand.vmem [shape: bf16[32,128], index: 1, kind: input, shape index: {}]
  %s2 = inlined_call_operand.hbm [shape: bf16[128,128], index: 2, kind: output, shape index: {}]
  %s3 = sld [smem:[#allocation0]]
  $region18: #{tpu_custom_call.1} parent=0
    _
  %s5 = ssub.s32 1, %s3
  %s6 = scalar_select 0, %s5, %s3
  $region1: #{tpu_custom_call.1} parent=0
    #allocation2 [shape = 'u8[32768]{0}', space=vmem, size = 0x8000, scoped, tag = 'output window, operand 0, single buffered']
    #allocation3 [shape = 's32[1]{0}', space=sflag, size = 0x4, scoped, tag = 'scoped memory for tpu_custom_call.1']
    %7 = vsyncpa [#allocation3], 0
    // Predicated region
    $region2: #{tpu_custom_call.1} parent=1 // pred_check
      _
    $region3: #{tpu_custom_call.1} parent=1 // pred_check_branch
      %9 = sbr.rel (0) target = $region5
    $region4: #{tpu_custom_call.1} parent=1 // pred_region
      _
    $region5: #{tpu_custom_call.1} parent=1 // pred_fallthru
      _
    // Predicated region
    $region6: #{tpu_custom_call.1} parent=1 // pred_check
      _
    $region7: #{tpu_custom_call.1} parent=1 // pred_check_branch
      %11 = sbr.rel (0) target = $region9
    $region8: #{tpu_custom_call.1} parent=1 // pred_region
      _
    $region9: #{tpu_custom_call.1} parent=1 // pred_fallthru
      _
    %v13 = vld [vmem:[%s0] sm:$0xf]
    %v14 = vld [vmem:[%s0 + $0x4] sm:$0xf]
    %v15 = vld [vmem:[%s0 + $0x8] sm:$0xf]
    %v16 = vld [vmem:[%s0 + $0xc] sm:$0xf]
    %v17 = vld [vmem:[%s0 + $0x10] sm:$0xf]
    %v18 = vld [vmem:[%s0 + $0x14] sm:$0xf]
    %v19 = vld [vmem:[%s0 + $0x18] sm:$0xf]
    %v20 = vld [vmem:[%s0 + $0x1c] sm:$0xf]
    %v21 = vld [vmem:[%s0 + $0x20] sm:$0xf]
    %v22 = vld [vmem:[%s0 + $0x24] sm:$0xf]
    %v23 = vld [vmem:[%s0 + $0x28] sm:$0xf]
    %v24 = vld [vmem:[%s0 + $0x2c] sm:$0xf]
    %v25 = vld [vmem:[%s0 + $0x30] sm:$0xf]
    %v26 = vld [vmem:[%s0 + $0x34] sm:$0xf]
    %v27 = vld [vmem:[%s0 + $0x38] sm:$0xf]
    %v28 = vld [vmem:[%s0 + $0x3c] sm:$0xf]
    %v29 = vld [vmem:[%s1] sm:$0xf]
    %v30 = vld [vmem:[%s1 + $0x4] sm:$0xf]
    %v31 = vld [vmem:[%s1 + $0x8] sm:$0xf]
    %v32 = vld [vmem:[%s1 + $0xc] sm:$0xf]
    %v49 = vunpack.c.l.b16 %v13
    %v50 = vunpack.c.l.b16 %v14
    %v51 = vunpack.c.l.b16 %v15
    %v52 = vunpack.c.l.b16 %v16
    %v53 = vunpack.c.l.b16 %v17
    %v54 = vunpack.c.l.b16 %v18
    %v55 = vunpack.c.l.b16 %v19
    %v56 = vunpack.c.l.b16 %v20
    %v57 = vunpack.c.l.b16 %v21
    %v58 = vunpack.c.l.b16 %v22
    %v59 = vunpack.c.l.b16 %v23
    %v60 = vunpack.c.l.b16 %v24
    %v61 = vunpack.c.l.b16 %v25
    %v62 = vunpack.c.l.b16 %v26
    %v63 = vunpack.c.l.b16 %v27
    %v64 = vunpack.c.l.b16 %v28
    %v65 = vpack.c.b16 %v50, %v49
    %v66 = vpack.c.b16 %v52, %v51
    %v67 = vpack.c.b16 %v54, %v53
    %v68 = vpack.c.b16 %v56, %v55
    %v69 = vpack.c.b16 %v58, %v57
    %v70 = vpack.c.b16 %v60, %v59
    %v71 = vpack.c.b16 %v62, %v61
    %v72 = vpack.c.b16 %v64, %v63
    %v77 = vunpack.c.l.b16 %v29
    %v78 = vunpack.c.l.b16 %v30
    %v79 = vunpack.c.l.b16 %v31
    %v80 = vunpack.c.l.b16 %v32
    %v81 = vpack.c.b16 %v78, %v77
    %v82 = vpack.c.b16 %v80, %v79
    %vm85 = vcmask 261120
    %v87 = vsel %vm85, %v65, 0
    %v90 = vsel %vm85, %v66, 0
    %v93 = vsel %vm85, %v67, 0
    %v96 = vsel %vm85, %v68, 0
    %v99 = vsel %vm85, %v69, 0
    %v102 = vsel %vm85, %v70, 0
    %v105 = vsel %vm85, %v71, 0
    %v108 = vsel %vm85, %v72, 0
    %110 = vmatpush.bf16.msra.mxu0 0
    %111 = vmatpush.bf16.msra.mxu0 0
    %112 = vmatpush.bf16.msra.mxu0 0
    %113 = vmatpush.bf16.msra.mxu0 0
    %114 = vmatpush.bf16.msra.mxu0 0
    %115 = vmatpush.bf16.msra.mxu0 0
    %116 = vmatpush.bf16.msra.mxu0 %v82
    %117 = vmatpush.bf16.msra.mxu0 %v81
    %118 = vmatmul.bf16.gmra.mxu0 %v87
    %v119 = vpop.f32.mrf.mxu0
    %v120 = vadd.f32 0.0, %v119
    %v121 = vpop.f32.mrf.mxu0
    %v122 = vadd.f32 0.0, %v121
    %123 = vmatmul.bf16.gmra.mxu0 %v90
    %v124 = vpop.f32.mrf.mxu0
    %v125 = vadd.f32 0.0, %v124
    %v126 = vpop.f32.mrf.mxu0
    %v127 = vadd.f32 0.0, %v126
    %128 = vmatmul.bf16.gmra.mxu0 %v93
    %v129 = vpop.f32.mrf.mxu0
    %v130 = vadd.f32 0.0, %v129
    %v131 = vpop.f32.mrf.mxu0
    %v132 = vadd.f32 0.0, %v131
    %133 = vmatmul.bf16.gmra.mxu0 %v96
    %v134 = vpop.f32.mrf.mxu0
    %v135 = vadd.f32 0.0, %v134
    %v136 = vpop.f32.mrf.mxu0
    %v137 = vadd.f32 0.0, %v136
    %138 = vmatmul.bf16.gmra.mxu0 %v99
    %v139 = vpop.f32.mrf.mxu0
    %v140 = vadd.f32 0.0, %v139
    %v141 = vpop.f32.mrf.mxu0
    %v142 = vadd.f32 0.0, %v141
    %143 = vmatmul.bf16.gmra.mxu0 %v102
    %v144 = vpop.f32.mrf.mxu0
    %v145 = vadd.f32 0.0, %v144
    %v146 = vpop.f32.mrf.mxu0
    %v147 = vadd.f32 0.0, %v146
    %148 = vmatmul.bf16.gmra.mxu0 %v105
    %v149 = vpop.f32.mrf.mxu0
    %v150 = vadd.f32 0.0, %v149
    %v151 = vpop.f32.mrf.mxu0
    %v152 = vadd.f32 0.0, %v151
    %153 = vmatmul.bf16.gmra.mxu0 %v108
    %v154 = vpop.f32.mrf.mxu0
    %v155 = vadd.f32 0.0, %v154
    %v156 = vpop.f32.mrf.mxu0
    %v157 = vadd.f32 0.0, %v156
    %158 = vdwg.mxu0
    %v159 = vpack.c.bf16 %v120, %v120
    %v160 = vpack.c.bf16 %v122, %v122
    %v161 = vpack.c.bf16 %v125, %v125
    %v162 = vpack.c.bf16 %v127, %v127
    %v163 = vpack.c.bf16 %v130, %v130
    %v164 = vpack.c.bf16 %v132, %v132
    %v165 = vpack.c.bf16 %v135, %v135
    %v166 = vpack.c.bf16 %v137, %v137
    %v167 = vpack.c.bf16 %v140, %v140
    %v168 = vpack.c.bf16 %v142, %v142
    %v169 = vpack.c.bf16 %v145, %v145
    %v170 = vpack.c.bf16 %v147, %v147
    %v171 = vpack.c.bf16 %v150, %v150
    %v172 = vpack.c.bf16 %v152, %v152
    %v173 = vpack.c.bf16 %v155, %v155
    %v174 = vpack.c.bf16 %v157, %v157
    %175 = vst [vmem:[#allocation2] sm:$0xf] %v159
    %176 = vst [vmem:[#allocation2 + $0x4] sm:$0xf] %v160
    %177 = vst [vmem:[#allocation2 + $0x8] sm:$0xf] %v161
    %178 = vst [vmem:[#allocation2 + $0xc] sm:$0xf] %v162
    %179 = vst [vmem:[#allocation2 + $0x10] sm:$0xf] %v163
    %180 = vst [vmem:[#allocation2 + $0x14] sm:$0xf] %v164
    %181 = vst [vmem:[#allocation2 + $0x18] sm:$0xf] %v165
    %182 = vst [vmem:[#allocation2 + $0x1c] sm:$0xf] %v166
    %183 = vst [vmem:[#allocation2 + $0x20] sm:$0xf] %v167
    %184 = vst [vmem:[#allocation2 + $0x24] sm:$0xf] %v168
    %185 = vst [vmem:[#allocation2 + $0x28] sm:$0xf] %v169
    %186 = vst [vmem:[#allocation2 + $0x2c] sm:$0xf] %v170
    %187 = vst [vmem:[#allocation2 + $0x30] sm:$0xf] %v171
    %188 = vst [vmem:[#allocation2 + $0x34] sm:$0xf] %v172
    %189 = vst [vmem:[#allocation2 + $0x38] sm:$0xf] %v173
    %190 = vst [vmem:[#allocation2 + $0x3c] sm:$0xf] %v174
    // Predicated region
    $region10: #{tpu_custom_call.1} parent=1 // pred_check
      _
    $region11: #{tpu_custom_call.1} parent=1 // pred_check_branch
      %192 = sbr.rel (0) target = $region13
    $region12: #{tpu_custom_call.1} parent=1 // pred_region
      %194 = vsyncadd [#allocation3], 0
      %s195 = sshll.u32 [#allocation2], 4
      %s196 = int_to_ptr.vmem [resolvable:$true] %s195
      %s197 = sshll.u32 %s2, 4
      %s198 = int_to_ptr.hbm [resolvable:$true] %s197
      %203 = dma.vmem_to_hbm [thread:$0]  %s196, 1024, %s198, [#allocation3], 64, 64, 4
    $region13: #{tpu_custom_call.1} parent=1 // pred_fallthru
      _
    // Predicated region
    $region14: #{tpu_custom_call.1} parent=1 // pred_check
      _
    $region15: #{tpu_custom_call.1} parent=1 // pred_check_branch
      %205 = sbr.rel (0) target = $region17
    $region16: #{tpu_custom_call.1} parent=1 // pred_region
      %207 = dma.done [#allocation3], 1024
    $region17: #{tpu_custom_call.1} parent=1 // pred_fallthru
      _
    %208 = vsyncpa [#allocation3], 1

</llo_original>
